<compile_context>
chip_gen: v7x
topology: tpu7x:2x2x1
jax: 0.10.0
libtpu: 0.0.40
codegen_flags: <defaults>
</compile_context>

<pallas_src>
import functools

import jax
import jax.numpy as jnp
from jax import lax
from jax.experimental import pallas as pl
from jax.experimental.pallas import tpu as pltpu
import numpy as np


def nlp_rnn_kernel(ids_ref, embproj_ref, whh_ref, wcls_ref, bcls_ref, out_ref,
                   *, seq_len):
    """Fused (embedding @ W_ih + bias) gather + tanh-RNN recurrence + classifier.

    ids_ref:     (T*B, 1) int32  time-major flattened token ids (row = t*B + b)
    embproj_ref: (Vp, D)  f32    folded table E @ W_ih + (b_ih + b_hh), vocab
                                 zero-padded to a multiple of 8 sublanes
    whh_ref:     (D, D)          hidden->hidden weight, stored (in, out)
    wcls_ref:    (D, Cp)         classifier weight, out dim zero-padded to 128 lanes
    bcls_ref:    (1, Cp)
    out_ref:     (B, Cp)         lane-dense logits (wrapper slices [:, :C])
    """
    TB = ids_ref.shape[0]
    Vp, D = embproj_ref.shape
    T = seq_len
    B = TB // T

    # --- embedding gather + input projection + bias in ONE one-hot MXU matmul ---
    ids = ids_ref[...]                                               # (T*B, 1)
    one_hot = (ids == lax.broadcasted_iota(jnp.int32, (TB, Vp), 1)
               ).astype(jnp.float32)                                 # (T*B, Vp)
    xproj = jnp.dot(one_hot, embproj_ref[...],
                    preferred_element_type=jnp.float32)              # (T*B, D)

    # --- recurrence: exactly one matmul + tanh per step on the critical path ---
    whh = whh_ref[...]
    h = jnp.zeros((B, D), dtype=jnp.float32)                         # h0 = 0 (nn.RNN default)
    for t in range(T):                                               # small static T -> unrolled
        # static slice on an 8-row (sublane-aligned) boundary
        h = jnp.tanh(xproj[t * B:(t + 1) * B, :]
                     + jnp.dot(h, whh, preferred_element_type=jnp.float32))

    # --- fused classifier on the last hidden state, lane-dense unmasked store ---
    out_ref[...] = (jnp.dot(h, wcls_ref[...], preferred_element_type=jnp.float32)
                    + bcls_ref[...])


def prepare_params(params):
    """One-time weight folding + padding so kernel tiles are sublane/lane aligned."""
    V, D = params["embedding"].shape
    C = params["b_cls"].shape[-1]
    Vp = ((V + 7) // 8) * 8
    Cp = ((C + 127) // 128) * 128

    # Fold input projection and both RNN biases into the embedding table.
    emb_fold = (params["embedding"] @ params["w_ih_t"]
                + params["b_ih"] + params["b_hh"])                   # (V, D)

    prepped = dict(params)
    prepped["emb_proj_p"] = jnp.zeros((Vp, D), jnp.float32).at[:V, :].set(emb_fold)
    prepped["w_cls_p"] = jnp.zeros((D, Cp), jnp.float32).at[:, :C].set(
        params["w_cls_t"])
    prepped["b_cls_p"] = jnp.zeros((1, Cp), jnp.float32).at[:, :C].set(
        params["b_cls"])
    return prepped


def nlpmodel_forward(token_ids, prepped):
    """Logits equivalent to Nlpmodel.forward(x) with no label (inference path)."""
    B, T = token_ids.shape
    C = prepped["b_cls"].shape[-1]
    Cp = prepped["b_cls_p"].shape[-1]

    # tiny glue: time-major flattened ids -> each step is a contiguous (B, D)
    # slice of the hoisted projection inside the kernel.
    ids_flat = token_ids.astype(jnp.int32).T.reshape(T * B, 1)

    out = pl.pallas_call(
        functools.partial(nlp_rnn_kernel, seq_len=T),
        out_shape=jax.ShapeDtypeStruct((B, Cp), jnp.float32),
        in_specs=[pl.BlockSpec(memory_space=pltpu.MemorySpace.VMEM)] * 5,
        out_specs=pl.BlockSpec(memory_space=pltpu.MemorySpace.VMEM),
    )(
        ids_flat,
        prepped["emb_proj_p"],
        prepped["w_hh_t"],
        prepped["w_cls_p"],
        prepped["b_cls_p"],
    )
    return out[:, :C]


def init_params(key, vocab_size, vector_dim, sentence_length):
    """Deterministic parameter init matching the PyTorch module's shapes."""
    D = vector_dim
    C = sentence_length + 1
    ks = jax.random.split(key, 7)
    bound = 1.0 / np.sqrt(D)
    return {
        "embedding": jax.random.normal(ks[0], (vocab_size, D), jnp.float32),
        # stored pre-transposed: (in, out)
        "w_ih_t": jax.random.uniform(ks[1], (D, D), jnp.float32, -bound, bound),
        "w_hh_t": jax.random.uniform(ks[2], (D, D), jnp.float32, -bound, bound),
        "b_ih": jax.random.uniform(ks[3], (1, D), jnp.float32, -bound, bound),
        "b_hh": jax.random.uniform(ks[4], (1, D), jnp.float32, -bound, bound),
        "w_cls_t": jax.random.uniform(ks[5], (D, C), jnp.float32, -bound, bound),
        "b_cls": jax.random.uniform(ks[6], (1, C), jnp.float32, -bound, bound),
    }


def reference_forward(token_ids, params):
    """Pure-JAX reference mirroring the PyTorch semantics exactly."""
    x = jnp.take(params["embedding"], token_ids, axis=0)
    B, T, D = x.shape
    h = jnp.zeros((B, D), jnp.float32)
    for t in range(T):
        h = jnp.tanh(x[:, t, :] @ params["w_ih_t"] + params["b_ih"]
                     + h @ params["w_hh_t"] + params["b_hh"])
    return h @ params["w_cls_t"] + params["b_cls"]


if __name__ == "__main__":
    # Small shapes consistent with the module: vocab=30, vector_dim=32, sentence_length=6
    vocab_size = 30
    vector_dim = 32
    sentence_length = 6
    batch = 8

    key = jax.random.PRNGKey(0)
    pkey, xkey = jax.random.split(key)
    params = init_params(pkey, vocab_size, vector_dim, sentence_length)
    prepped = prepare_params(params)

    token_ids = jax.random.randint(xkey, (batch, sentence_length), 0, vocab_size,
                                   dtype=jnp.int32)

    logits = nlpmodel_forward(token_ids, prepped)
    logits = jax.block_until_ready(logits)

    ref = reference_forward(token_ids, params)
    np.testing.assert_allclose(np.asarray(logits), np.asarray(ref),
                               rtol=1e-5, atol=1e-5)

    assert logits.shape == (batch, sentence_length + 1)
    # TODO(synk): training path (CrossEntropyLoss when y is provided) is not implemented.
    print("KERNEL_OK")
</pallas_src>

<mosaic_0001>
module attributes {stable_mosaic.version = 11 : i64} {
  func.func @nlp_rnn_kernel(%arg0: memref<48x1xi32, #tpu.memory_space<vmem>>, %arg1: memref<32x32xf32, #tpu.memory_space<vmem>>, %arg2: memref<32x32xf32, #tpu.memory_space<vmem>>, %arg3: memref<32x128xf32, #tpu.memory_space<vmem>>, %arg4: memref<1x128xf32, #tpu.memory_space<vmem>>, %arg5: memref<8x128xf32, #tpu.memory_space<vmem>>) attributes {dimension_semantics = [], scalar_prefetch = 0 : i64, scratch_operands = 0 : i64, tpu.core_type = #tpu.core_type<tc>} {
    %c0 = arith.constant 0 : index
    %c0_0 = arith.constant 0 : index
    %0 = vector.load %arg0[%c0, %c0_0] : memref<48x1xi32, #tpu.memory_space<vmem>>, vector<48x1xi32>
    %1 = tpu.iota {dimensions = array<i32: 1>} : vector<48x32xi32>
    %2 = vector.broadcast %0 : vector<48x1xi32> to vector<48x32xi32>
    %3 = arith.cmpi eq, %2, %1 : vector<48x32xi32>
    %4 = arith.extui %3 : vector<48x32xi1> to vector<48x32xi32>
    %5 = arith.sitofp %4 : vector<48x32xi32> to vector<48x32xf32>
    %c0_1 = arith.constant 0 : index
    %c0_2 = arith.constant 0 : index
    %6 = vector.load %arg1[%c0_1, %c0_2] : memref<32x32xf32, #tpu.memory_space<vmem>>, vector<32x32xf32>
    %cst = arith.constant dense<0.000000e+00> : vector<48x32xf32>
    %7 = tpu.matmul %5, %6, %cst {dimension_numbers = #tpu.dot_dimension_numbers<[1], [0], [0], [1], [0, 0, 1, 1], [], []>} : vector<48x32xf32>, vector<32x32xf32>, vector<48x32xf32> -> vector<48x32xf32>
    %c0_3 = arith.constant 0 : index
    %c0_4 = arith.constant 0 : index
    %8 = vector.load %arg2[%c0_3, %c0_4] : memref<32x32xf32, #tpu.memory_space<vmem>>, vector<32x32xf32>
    %cst_5 = arith.constant 0.000000e+00 : f32
    %9 = vector.broadcast %cst_5 : f32 to vector<8x32xf32>
    %10 = vector.extract_strided_slice %7 {offsets = [0, 0], sizes = [8, 32], strides = [1, 1]} : vector<48x32xf32> to vector<8x32xf32>
    %cst_6 = arith.constant dense<0.000000e+00> : vector<8x32xf32>
    %11 = tpu.matmul %9, %8, %cst_6 {dimension_numbers = #tpu.dot_dimension_numbers<[1], [0], [0], [1], [0, 0, 1, 1], [], []>} : vector<8x32xf32>, vector<32x32xf32>, vector<8x32xf32> -> vector<8x32xf32>
    %12 = arith.addf %10, %11 : vector<8x32xf32>
    %13 = math.tanh %12 : vector<8x32xf32>
    %14 = vector.extract_strided_slice %7 {offsets = [8, 0], sizes = [8, 32], strides = [1, 1]} : vector<48x32xf32> to vector<8x32xf32>
    %cst_7 = arith.constant dense<0.000000e+00> : vector<8x32xf32>
    %15 = tpu.matmul %13, %8, %cst_7 {dimension_numbers = #tpu.dot_dimension_numbers<[1], [0], [0], [1], [0, 0, 1, 1], [], []>} : vector<8x32xf32>, vector<32x32xf32>, vector<8x32xf32> -> vector<8x32xf32>
    %16 = arith.addf %14, %15 : vector<8x32xf32>
    %17 = math.tanh %16 : vector<8x32xf32>
    %18 = vector.extract_strided_slice %7 {offsets = [16, 0], sizes = [8, 32], strides = [1, 1]} : vector<48x32xf32> to vector<8x32xf32>
    %cst_8 = arith.constant dense<0.000000e+00> : vector<8x32xf32>
    %19 = tpu.matmul %17, %8, %cst_8 {dimension_numbers = #tpu.dot_dimension_numbers<[1], [0], [0], [1], [0, 0, 1, 1], [], []>} : vector<8x32xf32>, vector<32x32xf32>, vector<8x32xf32> -> vector<8x32xf32>
    %20 = arith.addf %18, %19 : vector<8x32xf32>
    %21 = math.tanh %20 : vector<8x32xf32>
    %22 = vector.extract_strided_slice %7 {offsets = [24, 0], sizes = [8, 32], strides = [1, 1]} : vector<48x32xf32> to vector<8x32xf32>
    %cst_9 = arith.constant dense<0.000000e+00> : vector<8x32xf32>
    %23 = tpu.matmul %21, %8, %cst_9 {dimension_numbers = #tpu.dot_dimension_numbers<[1], [0], [0], [1], [0, 0, 1, 1], [], []>} : vector<8x32xf32>, vector<32x32xf32>, vector<8x32xf32> -> vector<8x32xf32>
    %24 = arith.addf %22, %23 : vector<8x32xf32>
    %25 = math.tanh %24 : vector<8x32xf32>
    %26 = vector.extract_strided_slice %7 {offsets = [32, 0], sizes = [8, 32], strides = [1, 1]} : vector<48x32xf32> to vector<8x32xf32>
    %cst_10 = arith.constant dense<0.000000e+00> : vector<8x32xf32>
    %27 = tpu.matmul %25, %8, %cst_10 {dimension_numbers = #tpu.dot_dimension_numbers<[1], [0], [0], [1], [0, 0, 1, 1], [], []>} : vector<8x32xf32>, vector<32x32xf32>, vector<8x32xf32> -> vector<8x32xf32>
    %28 = arith.addf %26, %27 : vector<8x32xf32>
    %29 = math.tanh %28 : vector<8x32xf32>
    %30 = vector.extract_strided_slice %7 {offsets = [40, 0], sizes = [8, 32], strides = [1, 1]} : vector<48x32xf32> to vector<8x32xf32>
    %cst_11 = arith.constant dense<0.000000e+00> : vector<8x32xf32>
    %31 = tpu.matmul %29, %8, %cst_11 {dimension_numbers = #tpu.dot_dimension_numbers<[1], [0], [0], [1], [0, 0, 1, 1], [], []>} : vector<8x32xf32>, vector<32x32xf32>, vector<8x32xf32> -> vector<8x32xf32>
    %32 = arith.addf %30, %31 : vector<8x32xf32>
    %33 = math.tanh %32 : vector<8x32xf32>
    %c0_12 = arith.constant 0 : index
    %c0_13 = arith.constant 0 : index
    %34 = vector.load %arg3[%c0_12, %c0_13] : memref<32x128xf32, #tpu.memory_space<vmem>>, vector<32x128xf32>
    %cst_14 = arith.constant dense<0.000000e+00> : vector<8x128xf32>
    %35 = tpu.matmul %33, %34, %cst_14 {dimension_numbers = #tpu.dot_dimension_numbers<[1], [0], [0], [1], [0, 0, 1, 1], [], []>} : vector<8x32xf32>, vector<32x128xf32>, vector<8x128xf32> -> vector<8x128xf32>
    %c0_15 = arith.constant 0 : index
    %c0_16 = arith.constant 0 : index
    %36 = vector.load %arg4[%c0_15, %c0_16] : memref<1x128xf32, #tpu.memory_space<vmem>>, vector<1x128xf32>
    %37 = vector.broadcast %36 : vector<1x128xf32> to vector<8x128xf32>
    %38 = arith.addf %35, %37 : vector<8x128xf32>
    %c0_17 = arith.constant 0 : index
    %c0_18 = arith.constant 0 : index
    %39 = vector.load %arg5[%c0_17, %c0_18] : memref<8x128xf32, #tpu.memory_space<vmem>>, vector<8x128xf32>
    tpu.vector_store %arg5[%c0_17, %c0_18], %38 {strides = array<i32>} : memref<8x128xf32, #tpu.memory_space<vmem>>, vector<8x128xf32>,
    return
  }
}

</mosaic_0001>

<llo_original>
// kernel: tpu_custom_call.1
$region0: #{tpu_custom_call.1}
  #allocation0 [shape = 'u32[]', space=smem, size = 0x4, offset = 0x4, fixed_abs, tag = 'smem constant byte address 0x4 - core index']
  #allocation1 [shape = 'u32[144,128]{1,0:T(1,128)}', space=vmem, size = 0x12000, scoped, tag = 'internal scratch']
  %s0 = inlined_call_operand.vmem [shape: s32[48,1], index: 0, kind: input, shape index: {}]
  %s1 = inlined_call_operand.vmem [shape: f32[32,32], index: 1, kind: input, shape index: {}]
  %s2 = inlined_call_operand.hbm [shape: f32[32,32], index: 2, kind: input, shape index: {}]
  %s3 = inlined_call_operand.hbm [shape: f32[32,128], index: 3, kind: input, shape index: {}]
  %s4 = inlined_call_operand.vmem [shape: f32[1,128], index: 4, kind: input, shape index: {}]
  %s5 = inlined_call_operand.hbm [shape: f32[8,128], index: 5, kind: output, shape index: {}]
  %s6 = sld [smem:[#allocation0]]
  $region38: #{tpu_custom_call.1} parent=0
    _
  %s8 = ssub.s32 1, %s6
  %s9 = scalar_select 0, %s8, %s6
  $region1: #{tpu_custom_call.1} parent=0
    #allocation2 [shape = 'u8[16384]{0}', space=vmem, size = 0x4000, scoped, tag = 'input window, operand 2, single buffered']
    #allocation3 [shape = 's32[1]{0}', space=sflag, size = 0x4, scoped, tag = 'scoped memory for tpu_custom_call.1']
    #allocation4 [shape = 's32[1]{0}', space=sflag, size = 0x4, scoped, tag = 'scoped memory for tpu_custom_call.1']
    #allocation5 [shape = 'u8[16384]{0}', space=vmem, size = 0x4000, scoped, tag = 'input window, operand 3, single buffered']
    #allocation6 [shape = 's32[1]{0}', space=sflag, size = 0x4, scoped, tag = 'scoped memory for tpu_custom_call.1']
    #allocation7 [shape = 'u8[4096]{0}', space=vmem, size = 0x1000, scoped, tag = 'output window, operand 0, single buffered']
    %10 = vsyncpa [#allocation3], 0
    %11 = vsyncpa [#allocation6], 0
    %12 = vsyncpa [#allocation4], 0
    // Predicated region
    $region2: #{tpu_custom_call.1} parent=1 // pred_check
      _
    $region3: #{tpu_custom_call.1} parent=1 // pred_check_branch
      %14 = sbr.rel (0) target = $region5
    $region4: #{tpu_custom_call.1} parent=1 // pred_region
      _
    $region5: #{tpu_custom_call.1} parent=1 // pred_fallthru
      _
    // Predicated region
    $region6: #{tpu_custom_call.1} parent=1 // pred_check
      _
    $region7: #{tpu_custom_call.1} parent=1 // pred_check_branch
      %16 = sbr.rel (0) target = $region9
    $region8: #{tpu_custom_call.1} parent=1 // pred_region
      _
    $region9: #{tpu_custom_call.1} parent=1 // pred_fallthru
      _
    // Predicated region
    $region10: #{tpu_custom_call.1} parent=1 // pred_check
      _
    $region11: #{tpu_custom_call.1} parent=1 // pred_check_branch
      %18 = sbr.rel (0) target = $region13
    $region12: #{tpu_custom_call.1} parent=1 // pred_region
      %s20 = ssub.s32 512, 512
      %21 = vsyncadd [#allocation3], %s20
      %s22 = sshll.u32 [#allocation2], 4
      %s23 = int_to_ptr.vmem [resolvable:$true] %s22
      %28 = dma.hbm_to_vmem [thread:$0]  %s2, 512, %s23, [#allocation3], 128, 128, 8
    $region13: #{tpu_custom_call.1} parent=1 // pred_fallthru
      _
    // Predicated region
    $region14: #{tpu_custom_call.1} parent=1 // pred_check
      _
    $region15: #{tpu_custom_call.1} parent=1 // pred_check_branch
      %30 = sbr.rel (0) target = $region17
    $region16: #{tpu_custom_call.1} parent=1 // pred_region
      %s32 = ssub.s32 512, 512
      %33 = vsyncadd [#allocation6], %s32
      %s34 = sshll.u32 [#allocation5], 4
      %s35 = int_to_ptr.vmem [resolvable:$true] %s34
      %40 = dma.hbm_to_vmem [thread:$0]  %s3, 512, %s35, [#allocation6], 128, 128, 8
    $region17: #{tpu_custom_call.1} parent=1 // pred_fallthru
      _
    // Predicated region
    $region18: #{tpu_custom_call.1} parent=1 // pred_check
      _
    $region19: #{tpu_custom_call.1} parent=1 // pred_check_branch
      %42 = sbr.rel (0) target = $region21
    $region20: #{tpu_custom_call.1} parent=1 // pred_region
      _
    $region21: #{tpu_custom_call.1} parent=1 // pred_fallthru
      _
    // Predicated region
    $region22: #{tpu_custom_call.1} parent=1 // pred_check
      _
    $region23: #{tpu_custom_call.1} parent=1 // pred_check_branch
      %44 = sbr.rel (0) target = $region25
    $region24: #{tpu_custom_call.1} parent=1 // pred_region
      %45 = dma.done [#allocation3], 512
    $region25: #{tpu_custom_call.1} parent=1 // pred_fallthru
      _
    // Predicated region
    $region26: #{tpu_custom_call.1} parent=1 // pred_check
      _
    $region27: #{tpu_custom_call.1} parent=1 // pred_check_branch
      %47 = sbr.rel (0) target = $region29
    $region28: #{tpu_custom_call.1} parent=1 // pred_region
      %48 = dma.done [#allocation6], 512
    $region29: #{tpu_custom_call.1} parent=1 // pred_fallthru
      _
    %v49 = vld [vmem:[%s0] sm:$0xff]
    %v50 = vld [vmem:[%s0 + $0x8] sm:$0xff]
    %v51 = vld [vmem:[%s0 + $0x10] sm:$0xff]
    %v52 = vld [vmem:[%s0 + $0x18] sm:$0xff]
    %v53 = vld [vmem:[%s0 + $0x20] sm:$0xff]
    %v54 = vld [vmem:[%s0 + $0x28] sm:$0xff]
    %v55 = vlaneseq
    %v56 = vand.u32 %v55, 127
    %57 = vset.pattern.permute.xlu0 0
    %58 = vperm.xlu0 %57, %v49
    %v59 = vpop.permute.xlu0 %58
    %60 = vset.pattern.permute.xlu0 0
    %61 = vperm.xlu0 %60, %v50
    %v62 = vpop.permute.xlu0 %61
    %63 = vset.pattern.permute.xlu0 0
    %64 = vperm.xlu0 %63, %v51
    %v65 = vpop.permute.xlu0 %64
    %66 = vset.pattern.permute.xlu0 0
    %67 = vperm.xlu0 %66, %v52
    %v68 = vpop.permute.xlu0 %67
    %69 = vset.pattern.permute.xlu0 0
    %70 = vperm.xlu0 %69, %v53
    %v71 = vpop.permute.xlu0 %70
    %72 = vset.pattern.permute.xlu0 0
    %73 = vperm.xlu0 %72, %v54
    %v74 = vpop.permute.xlu0 %73
    %vm75 = vcmp.eq.s32.totalorder %v59, %v56
    %vm76 = vcmp.eq.s32.totalorder %v62, %v56
    %vm77 = vcmp.eq.s32.totalorder %v65, %v56
    %vm78 = vcmp.eq.s32.totalorder %v68, %v56
    %vm79 = vcmp.eq.s32.totalorder %v71, %v56
    %vm80 = vcmp.eq.s32.totalorder %v74, %v56
    %v81 = vsel %vm75, 1, 0
    %v82 = vsel %vm76, 1, 0
    %v83 = vsel %vm77, 1, 0
    %v84 = vsel %vm78, 1, 0
    %v85 = vsel %vm79, 1, 0
    %v86 = vsel %vm80, 1, 0
    %v87 = vcvt.s32.f32 %v81
    %v88 = vcvt.s32.f32 %v82
    %v89 = vcvt.s32.f32 %v83
    %v90 = vcvt.s32.f32 %v84
    %v91 = vcvt.s32.f32 %v85
    %v92 = vcvt.s32.f32 %v86
    %v93 = vld [vmem:[%s1] sm:$0xff]
    %v94 = vld [vmem:[%s1 + $0x8] sm:$0xff]
    %v95 = vld [vmem:[%s1 + $0x10] sm:$0xff]
    %v96 = vld [vmem:[%s1 + $0x18] sm:$0xff]
    %vm97 = vcmask 261120
    %v99 = vsel %vm97, %v87, 0
    %v102 = vsel %vm97, %v88, 0
    %v105 = vsel %vm97, %v89, 0
    %v108 = vsel %vm97, %v90, 0
    %v111 = vsel %vm97, %v91, 0
    %v114 = vsel %vm97, %v92, 0
    %116 = vmatprep.subr.mxu0 0.0
    %117 = vmatpush1.msra.mxu0 %v93
    %118 = vmatprep.subr.mxu0 0.0
    %119 = vmatpush1.msra.mxu0 %v94
    %120 = vmatprep.subr.mxu0 0.0
    %121 = vmatpush1.msra.mxu0 %v95
    %122 = vmatprep.subr.mxu0 0.0
    %123 = vmatpush1.msra.mxu0 %v96
    %124 = vmatprep.subr.mxu0 0.0
    %125 = vmatpush1.msra.mxu0 0.0
    %126 = vmatprep.subr.mxu0 0.0
    %127 = vmatpush1.msra.mxu0 0.0
    %128 = vmatprep.subr.mxu0 0.0
    %129 = vmatpush1.msra.mxu0 0.0
    %130 = vmatprep.subr.mxu0 0.0
    %131 = vmatpush1.msra.mxu0 0.0
    %132 = vmatprep.subr.mxu0 0.0
    %133 = vmatpush1.msra.mxu0 0.0
    %134 = vmatprep.subr.mxu0 0.0
    %135 = vmatpush1.msra.mxu0 0.0
    %136 = vmatprep.subr.mxu0 0.0
    %137 = vmatpush1.msra.mxu0 0.0
    %138 = vmatprep.subr.mxu0 0.0
    %139 = vmatpush1.msra.mxu0 0.0
    %140 = vmatprep.subr.mxu0 0.0
    %141 = vmatpush1.msra.mxu0 0.0
    %142 = vmatprep.subr.mxu0 0.0
    %143 = vmatpush1.msra.mxu0 0.0
    %144 = vmatprep.subr.mxu0 0.0
    %145 = vmatpush1.msra.mxu0 0.0
    %146 = vmatprep.subr.mxu0 0.0
    %147 = vmatpush1.msra.mxu0 0.0
    %148 = vmatprep.subr.mxu0 0.0
    %149 = vmatpush1.msra.mxu0 0.0
    %150 = vmatprep.subr.mxu0 0.0
    %151 = vmatpush1.msra.mxu0 0.0
    %152 = vmatprep.subr.mxu0 0.0
    %153 = vmatpush1.msra.mxu0 0.0
    %154 = vmatprep.subr.mxu0 0.0
    %155 = vmatpush1.msra.mxu0 0.0
    %156 = vmatprep.subr.mxu0 0.0
    %157 = vmatpush1.msra.mxu0 0.0
    %158 = vmatprep.subr.mxu0 0.0
    %159 = vmatpush1.msra.mxu0 0.0
    %160 = vmatprep.subr.mxu0 0.0
    %161 = vmatpush1.msra.mxu0 0.0
    %162 = vmatprep.subr.mxu0 0.0
    %163 = vmatpush1.msra.mxu0 0.0
    %164 = vmatprep.subr.mxu0 0.0
    %165 = vmatpush1.msra.mxu0 0.0
    %166 = vmatprep.subr.mxu0 0.0
    %167 = vmatpush1.msra.mxu0 0.0
    %168 = vmatprep.subr.mxu0 0.0
    %169 = vmatpush1.msra.mxu0 0.0
    %170 = vmatprep.subr.mxu0 0.0
    %171 = vmatpush1.msra.mxu0 0.0
    %172 = vmatprep.subr.mxu0 0.0
    %173 = vmatpush1.msra.mxu0 0.0
    %174 = vmatprep.subr.mxu0 0.0
    %175 = vmatpush1.msra.mxu0 0.0
    %176 = vmatprep.subr.mxu0 0.0
    %177 = vmatpush1.msra.mxu0 0.0
    %178 = vmatprep.subr.mxu0 0.0
    %179 = vmatpush1.msra.mxu0 0.0
    %180 = vmatprep.mubr.f32.mxu0 0.0
    %181 = vmatmul.mubr.f32.gmra.mrb[0].mxu0 %v99
    %v182 = vpop.f32.mrb[0].mxu0
    %v183 = vadd.f32 0.0, %v182
    %v184 = vpop.f32.mrb[0].mxu0
    %185 = vmatprep.mubr.f32.mxu0 0.0
    %186 = vmatmul.mubr.f32.gmra.mrb[0].mxu0 %v102
    %v187 = vpop.f32.mrb[0].mxu0
    %v188 = vadd.f32 0.0, %v187
    %v189 = vpop.f32.mrb[0].mxu0
    %190 = vmatprep.mubr.f32.mxu0 0.0
    %191 = vmatmul.mubr.f32.gmra.mrb[0].mxu0 %v105
    %v192 = vpop.f32.mrb[0].mxu0
    %v193 = vadd.f32 0.0, %v192
    %v194 = vpop.f32.mrb[0].mxu0
    %195 = vmatprep.mubr.f32.mxu0 0.0
    %196 = vmatmul.mubr.f32.gmra.mrb[0].mxu0 %v108
    %v197 = vpop.f32.mrb[0].mxu0
    %v198 = vadd.f32 0.0, %v197
    %v199 = vpop.f32.mrb[0].mxu0
    %200 = vmatprep.mubr.f32.mxu0 0.0
    %201 = vmatmul.mubr.f32.gmra.mrb[0].mxu0 %v111
    %v202 = vpop.f32.mrb[0].mxu0
    %v203 = vadd.f32 0.0, %v202
    %v204 = vpop.f32.mrb[0].mxu0
    %205 = vmatprep.mubr.f32.mxu0 0.0
    %206 = vmatmul.mubr.f32.gmra.mrb[0].mxu0 %v114
    %v207 = vpop.f32.mrb[0].mxu0
    %v208 = vadd.f32 0.0, %v207
    %v209 = vpop.f32.mrb[0].mxu0
    %210 = vdwg.mxu0
    %v211 = vld [vmem:[#allocation2] sm:$0xff]
    %v212 = vld [vmem:[#allocation2 + $0x8] sm:$0xff]
    %v213 = vld [vmem:[#allocation2 + $0x10] sm:$0xff]
    %v214 = vld [vmem:[#allocation2 + $0x18] sm:$0xff]
    %v216 = vsel %vm97, 0.0, 0
    %218 = vmatprep.subr.mxu0 0.0
    %219 = vmatpush1.msra.mxu0 %v211
    %220 = vmatprep.subr.mxu0 0.0
    %221 = vmatpush1.msra.mxu0 %v212
    %222 = vmatprep.subr.mxu0 0.0
    %223 = vmatpush1.msra.mxu0 %v213
    %224 = vmatprep.subr.mxu0 0.0
    %225 = vmatpush1.msra.mxu0 %v214
    %226 = vmatprep.subr.mxu0 0.0
    %227 = vmatpush1.msra.mxu0 0.0
    %228 = vmatprep.subr.mxu0 0.0
    %229 = vmatpush1.msra.mxu0 0.0
    %230 = vmatprep.subr.mxu0 0.0
    %231 = vmatpush1.msra.mxu0 0.0
    %232 = vmatprep.subr.mxu0 0.0
    %233 = vmatpush1.msra.mxu0 0.0
    %234 = vmatprep.subr.mxu0 0.0
    %235 = vmatpush1.msra.mxu0 0.0
    %236 = vmatprep.subr.mxu0 0.0
    %237 = vmatpush1.msra.mxu0 0.0
    %238 = vmatprep.subr.mxu0 0.0
    %239 = vmatpush1.msra.mxu0 0.0
    %240 = vmatprep.subr.mxu0 0.0
    %241 = vmatpush1.msra.mxu0 0.0
    %242 = vmatprep.subr.mxu0 0.0
    %243 = vmatpush1.msra.mxu0 0.0
    %244 = vmatprep.subr.mxu0 0.0
    %245 = vmatpush1.msra.mxu0 0.0
    %246 = vmatprep.subr.mxu0 0.0
    %247 = vmatpush1.msra.mxu0 0.0
    %248 = vmatprep.subr.mxu0 0.0
    %249 = vmatpush1.msra.mxu0 0.0
    %250 = vmatprep.subr.mxu0 0.0
    %251 = vmatpush1.msra.mxu0 0.0
    %252 = vmatprep.subr.mxu0 0.0
    %253 = vmatpush1.msra.mxu0 0.0
    %254 = vmatprep.subr.mxu0 0.0
    %255 = vmatpush1.msra.mxu0 0.0
    %256 = vmatprep.subr.mxu0 0.0
    %257 = vmatpush1.msra.mxu0 0.0
    %258 = vmatprep.subr.mxu0 0.0
    %259 = vmatpush1.msra.mxu0 0.0
    %260 = vmatprep.subr.mxu0 0.0
    %261 = vmatpush1.msra.mxu0 0.0
    %262 = vmatprep.subr.mxu0 0.0
    %263 = vmatpush1.msra.mxu0 0.0
    %264 = vmatprep.subr.mxu0 0.0
    %265 = vmatpush1.msra.mxu0 0.0
    %266 = vmatprep.subr.mxu0 0.0
    %267 = vmatpush1.msra.mxu0 0.0
    %268 = vmatprep.subr.mxu0 0.0
    %269 = vmatpush1.msra.mxu0 0.0
    %270 = vmatprep.subr.mxu0 0.0
    %271 = vmatpush1.msra.mxu0 0.0
    %272 = vmatprep.subr.mxu0 0.0
    %273 = vmatpush1.msra.mxu0 0.0
    %274 = vmatprep.subr.mxu0 0.0
    %275 = vmatpush1.msra.mxu0 0.0
    %276 = vmatprep.subr.mxu0 0.0
    %277 = vmatpush1.msra.mxu0 0.0
    %278 = vmatprep.subr.mxu0 0.0
    %279 = vmatpush1.msra.mxu0 0.0
    %280 = vmatprep.subr.mxu0 0.0
    %281 = vmatpush1.msra.mxu0 0.0
    %282 = vmatprep.mubr.f32.mxu0 0.0
    %283 = vmatmul.mubr.f32.gmra.mrb[0].mxu0 %v216
    %v284 = vpop.f32.mrb[0].mxu0
    %v285 = vadd.f32 0.0, %v284
    %v286 = vpop.f32.mrb[0].mxu0
    %287 = vdwg.mxu0
    %v288 = vadd.f32 %v183, %v285
    %v289 = vtanh.pop %v288
    %v291 = vsel %vm97, %v289, 0
    %293 = vmatprep.subr.mxu0 0.0
    %294 = vmatpush1.msra.mxu0 %v211
    %295 = vmatprep.subr.mxu0 0.0
    %296 = vmatpush1.msra.mxu0 %v212
    %297 = vmatprep.subr.mxu0 0.0
    %298 = vmatpush1.msra.mxu0 %v213
    %299 = vmatprep.subr.mxu0 0.0
    %300 = vmatpush1.msra.mxu0 %v214
    %301 = vmatprep.subr.mxu0 0.0
    %302 = vmatpush1.msra.mxu0 0.0
    %303 = vmatprep.subr.mxu0 0.0
    %304 = vmatpush1.msra.mxu0 0.0
    %305 = vmatprep.subr.mxu0 0.0
    %306 = vmatpush1.msra.mxu0 0.0
    %307 = vmatprep.subr.mxu0 0.0
    %308 = vmatpush1.msra.mxu0 0.0
    %309 = vmatprep.subr.mxu0 0.0
    %310 = vmatpush1.msra.mxu0 0.0
    %311 = vmatprep.subr.mxu0 0.0
    %312 = vmatpush1.msra.mxu0 0.0
    %313 = vmatprep.subr.mxu0 0.0
    %314 = vmatpush1.msra.mxu0 0.0
    %315 = vmatprep.subr.mxu0 0.0
    %316 = vmatpush1.msra.mxu0 0.0
    %317 = vmatprep.subr.mxu0 0.0
    %318 = vmatpush1.msra.mxu0 0.0
    %319 = vmatprep.subr.mxu0 0.0
    %320 = vmatpush1.msra.mxu0 0.0
    %321 = vmatprep.subr.mxu0 0.0
    %322 = vmatpush1.msra.mxu0 0.0
    %323 = vmatprep.subr.mxu0 0.0
    %324 = vmatpush1.msra.mxu0 0.0
    %325 = vmatprep.subr.mxu0 0.0
    %326 = vmatpush1.msra.mxu0 0.0
    %327 = vmatprep.subr.mxu0 0.0
    %328 = vmatpush1.msra.mxu0 0.0
    %329 = vmatprep.subr.mxu0 0.0
    %330 = vmatpush1.msra.mxu0 0.0
    %331 = vmatprep.subr.mxu0 0.0
    %332 = vmatpush1.msra.mxu0 0.0
    %333 = vmatprep.subr.mxu0 0.0
    %334 = vmatpush1.msra.mxu0 0.0
    %335 = vmatprep.subr.mxu0 0.0
    %336 = vmatpush1.msra.mxu0 0.0
    %337 = vmatprep.subr.mxu0 0.0
    %338 = vmatpush1.msra.mxu0 0.0
    %339 = vmatprep.subr.mxu0 0.0
    %340 = vmatpush1.msra.mxu0 0.0
    %341 = vmatprep.subr.mxu0 0.0
    %342 = vmatpush1.msra.mxu0 0.0
    %343 = vmatprep.subr.mxu0 0.0
    %344 = vmatpush1.msra.mxu0 0.0
    %345 = vmatprep.subr.mxu0 0.0
    %346 = vmatpush1.msra.mxu0 0.0
    %347 = vmatprep.subr.mxu0 0.0
    %348 = vmatpush1.msra.mxu0 0.0
    %349 = vmatprep.subr.mxu0 0.0
    %350 = vmatpush1.msra.mxu0 0.0
    %351 = vmatprep.subr.mxu0 0.0
    %352 = vmatpush1.msra.mxu0 0.0
    %353 = vmatprep.subr.mxu0 0.0
    %354 = vmatpush1.msra.mxu0 0.0
    %355 = vmatprep.subr.mxu0 0.0
    %356 = vmatpush1.msra.mxu0 0.0
    %357 = vmatprep.mubr.f32.mxu0 0.0
    %358 = vmatmul.mubr.f32.gmra.mrb[0].mxu0 %v291
    %v359 = vpop.f32.mrb[0].mxu0
    %v360 = vadd.f32 0.0, %v359
    %v361 = vpop.f32.mrb[0].mxu0
    %362 = vdwg.mxu0
    %v363 = vadd.f32 %v188, %v360
    %v364 = vtanh.pop %v363
    %v366 = vsel %vm97, %v364, 0
    %368 = vmatprep.subr.mxu0 0.0
    %369 = vmatpush1.msra.mxu0 %v211
    %370 = vmatprep.subr.mxu0 0.0
    %371 = vmatpush1.msra.mxu0 %v212
    %372 = vmatprep.subr.mxu0 0.0
    %373 = vmatpush1.msra.mxu0 %v213
    %374 = vmatprep.subr.mxu0 0.0
    %375 = vmatpush1.msra.mxu0 %v214
    %376 = vmatprep.subr.mxu0 0.0
    %377 = vmatpush1.msra.mxu0 0.0
    %378 = vmatprep.subr.mxu0 0.0
    %379 = vmatpush1.msra.mxu0 0.0
    %380 = vmatprep.subr.mxu0 0.0
    %381 = vmatpush1.msra.mxu0 0.0
    %382 = vmatprep.subr.mxu0 0.0
    %383 = vmatpush1.msra.mxu0 0.0
    %384 = vmatprep.subr.mxu0 0.0
    %385 = vmatpush1.msra.mxu0 0.0
    %386 = vmatprep.subr.mxu0 0.0
    %387 = vmatpush1.msra.mxu0 0.0
    %388 = vmatprep.subr.mxu0 0.0
    %389 = vmatpush1.msra.mxu0 0.0
    %390 = vmatprep.subr.mxu0 0.0
    %391 = vmatpush1.msra.mxu0 0.0
    %392 = vmatprep.subr.mxu0 0.0
    %393 = vmatpush1.msra.mxu0 0.0
    %394 = vmatprep.subr.mxu0 0.0
    %395 = vmatpush1.msra.mxu0 0.0
    %396 = vmatprep.subr.mxu0 0.0
    %397 = vmatpush1.msra.mxu0 0.0
    %398 = vmatprep.subr.mxu0 0.0
    %399 = vmatpush1.msra.mxu0 0.0
    %400 = vmatprep.subr.mxu0 0.0
    %401 = vmatpush1.msra.mxu0 0.0
    %402 = vmatprep.subr.mxu0 0.0
    %403 = vmatpush1.msra.mxu0 0.0
    %404 = vmatprep.subr.mxu0 0.0
    %405 = vmatpush1.msra.mxu0 0.0
    %406 = vmatprep.subr.mxu0 0.0
    %407 = vmatpush1.msra.mxu0 0.0
    %408 = vmatprep.subr.mxu0 0.0
    %409 = vmatpush1.msra.mxu0 0.0
    %410 = vmatprep.subr.mxu0 0.0
    %411 = vmatpush1.msra.mxu0 0.0
    %412 = vmatprep.subr.mxu0 0.0
    %413 = vmatpush1.msra.mxu0 0.0
    %414 = vmatprep.subr.mxu0 0.0
    %415 = vmatpush1.msra.mxu0 0.0
    %416 = vmatprep.subr.mxu0 0.0
    %417 = vmatpush1.msra.mxu0 0.0
    %418 = vmatprep.subr.mxu0 0.0
    %419 = vmatpush1.msra.mxu0 0.0
    %420 = vmatprep.subr.mxu0 0.0
    %421 = vmatpush1.msra.mxu0 0.0
    %422 = vmatprep.subr.mxu0 0.0
    %423 = vmatpush1.msra.mxu0 0.0
    %424 = vmatprep.subr.mxu0 0.0
    %425 = vmatpush1.msra.mxu0 0.0
    %426 = vmatprep.subr.mxu0 0.0
    %427 = vmatpush1.msra.mxu0 0.0
    %428 = vmatprep.subr.mxu0 0.0
    %429 = vmatpush1.msra.mxu0 0.0
    %430 = vmatprep.subr.mxu0 0.0
    %431 = vmatpush1.msra.mxu0 0.0
    %432 = vmatprep.mubr.f32.mxu0 0.0
    %433 = vmatmul.mubr.f32.gmra.mrb[0].mxu0 %v366
    %v434 = vpop.f32.mrb[0].mxu0
    %v435 = vadd.f32 0.0, %v434
    %v436 = vpop.f32.mrb[0].mxu0
    %437 = vdwg.mxu0
    %v438 = vadd.f32 %v193, %v435
    %v439 = vtanh.pop %v438
    %v441 = vsel %vm97, %v439, 0
    %443 = vmatprep.subr.mxu0 0.0
    %444 = vmatpush1.msra.mxu0 %v211
    %445 = vmatprep.subr.mxu0 0.0
    %446 = vmatpush1.msra.mxu0 %v212
    %447 = vmatprep.subr.mxu0 0.0
    %448 = vmatpush1.msra.mxu0 %v213
    %449 = vmatprep.subr.mxu0 0.0
    %450 = vmatpush1.msra.mxu0 %v214
    %451 = vmatprep.subr.mxu0 0.0
    %452 = vmatpush1.msra.mxu0 0.0
    %453 = vmatprep.subr.mxu0 0.0
    %454 = vmatpush1.msra.mxu0 0.0
    %455 = vmatprep.subr.mxu0 0.0
    %456 = vmatpush1.msra.mxu0 0.0
    %457 = vmatprep.subr.mxu0 0.0
    %458 = vmatpush1.msra.mxu0 0.0
    %459 = vmatprep.subr.mxu0 0.0
    %460 = vmatpush1.msra.mxu0 0.0
    %461 = vmatprep.subr.mxu0 0.0
    %462 = vmatpush1.msra.mxu0 0.0
    %463 = vmatprep.subr.mxu0 0.0
    %464 = vmatpush1.msra.mxu0 0.0
    %465 = vmatprep.subr.mxu0 0.0
    %466 = vmatpush1.msra.mxu0 0.0
    %467 = vmatprep.subr.mxu0 0.0
    %468 = vmatpush1.msra.mxu0 0.0
    %469 = vmatprep.subr.mxu0 0.0
    %470 = vmatpush1.msra.mxu0 0.0
    %471 = vmatprep.subr.mxu0 0.0
    %472 = vmatpush1.msra.mxu0 0.0
    %473 = vmatprep.subr.mxu0 0.0
    %474 = vmatpush1.msra.mxu0 0.0
    %475 = vmatprep.subr.mxu0 0.0
    %476 = vmatpush1.msra.mxu0 0.0
    %477 = vmatprep.subr.mxu0 0.0
    %478 = vmatpush1.msra.mxu0 0.0
    %479 = vmatprep.subr.mxu0 0.0
    %480 = vmatpush1.msra.mxu0 0.0
    %481 = vmatprep.subr.mxu0 0.0
    %482 = vmatpush1.msra.mxu0 0.0
    %483 = vmatprep.subr.mxu0 0.0
    %484 = vmatpush1.msra.mxu0 0.0
    %485 = vmatprep.subr.mxu0 0.0
    %486 = vmatpush1.msra.mxu0 0.0
    %487 = vmatprep.subr.mxu0 0.0
    %488 = vmatpush1.msra.mxu0 0.0
    %489 = vmatprep.subr.mxu0 0.0
    %490 = vmatpush1.msra.mxu0 0.0
    %491 = vmatprep.subr.mxu0 0.0
    %492 = vmatpush1.msra.mxu0 0.0
    %493 = vmatprep.subr.mxu0 0.0
    %494 = vmatpush1.msra.mxu0 0.0
    %495 = vmatprep.subr.mxu0 0.0
    %496 = vmatpush1.msra.mxu0 0.0
    %497 = vmatprep.subr.mxu0 0.0
    %498 = vmatpush1.msra.mxu0 0.0
    %499 = vmatprep.subr.mxu0 0.0
    %500 = vmatpush1.msra.mxu0 0.0
    %501 = vmatprep.subr.mxu0 0.0
    %502 = vmatpush1.msra.mxu0 0.0
    %503 = vmatprep.subr.mxu0 0.0
    %504 = vmatpush1.msra.mxu0 0.0
    %505 = vmatprep.subr.mxu0 0.0
    %506 = vmatpush1.msra.mxu0 0.0
    %507 = vmatprep.mubr.f32.mxu0 0.0
    %508 = vmatmul.mubr.f32.gmra.mrb[0].mxu0 %v441
    %v509 = vpop.f32.mrb[0].mxu0
    %v510 = vadd.f32 0.0, %v509
    %v511 = vpop.f32.mrb[0].mxu0
    %512 = vdwg.mxu0
    %v513 = vadd.f32 %v198, %v510
    %v514 = vtanh.pop %v513
    %v516 = vsel %vm97, %v514, 0
    %518 = vmatprep.subr.mxu0 0.0
    %519 = vmatpush1.msra.mxu0 %v211
    %520 = vmatprep.subr.mxu0 0.0
    %521 = vmatpush1.msra.mxu0 %v212
    %522 = vmatprep.subr.mxu0 0.0
    %523 = vmatpush1.msra.mxu0 %v213
    %524 = vmatprep.subr.mxu0 0.0
    %525 = vmatpush1.msra.mxu0 %v214
    %526 = vmatprep.subr.mxu0 0.0
    %527 = vmatpush1.msra.mxu0 0.0
    %528 = vmatprep.subr.mxu0 0.0
    %529 = vmatpush1.msra.mxu0 0.0
    %530 = vmatprep.subr.mxu0 0.0
    %531 = vmatpush1.msra.mxu0 0.0
    %532 = vmatprep.subr.mxu0 0.0
    %533 = vmatpush1.msra.mxu0 0.0
    %534 = vmatprep.subr.mxu0 0.0
    %535 = vmatpush1.msra.mxu0 0.0
    %536 = vmatprep.subr.mxu0 0.0
    %537 = vmatpush1.msra.mxu0 0.0
    %538 = vmatprep.subr.mxu0 0.0
    %539 = vmatpush1.msra.mxu0 0.0
    %540 = vmatprep.subr.mxu0 0.0
    %541 = vmatpush1.msra.mxu0 0.0
    %542 = vmatprep.subr.mxu0 0.0
    %543 = vmatpush1.msra.mxu0 0.0
    %544 = vmatprep.subr.mxu0 0.0
    %545 = vmatpush1.msra.mxu0 0.0
    %546 = vmatprep.subr.mxu0 0.0
    %547 = vmatpush1.msra.mxu0 0.0
    %548 = vmatprep.subr.mxu0 0.0
    %549 = vmatpush1.msra.mxu0 0.0
    %550 = vmatprep.subr.mxu0 0.0
    %551 = vmatpush1.msra.mxu0 0.0
    %552 = vmatprep.subr.mxu0 0.0
    %553 = vmatpush1.msra.mxu0 0.0
    %554 = vmatprep.subr.mxu0 0.0
    %555 = vmatpush1.msra.mxu0 0.0
    %556 = vmatprep.subr.mxu0 0.0
    %557 = vmatpush1.msra.mxu0 0.0
    %558 = vmatprep.subr.mxu0 0.0
    %559 = vmatpush1.msra.mxu0 0.0
    %560 = vmatprep.subr.mxu0 0.0
    %561 = vmatpush1.msra.mxu0 0.0
    %562 = vmatprep.subr.mxu0 0.0
    %563 = vmatpush1.msra.mxu0 0.0
    %564 = vmatprep.subr.mxu0 0.0
    %565 = vmatpush1.msra.mxu0 0.0
    %566 = vmatprep.subr.mxu0 0.0
    %567 = vmatpush1.msra.mxu0 0.0
    %568 = vmatprep.subr.mxu0 0.0
    %569 = vmatpush1.msra.mxu0 0.0
    %570 = vmatprep.subr.mxu0 0.0
    %571 = vmatpush1.msra.mxu0 0.0
    %572 = vmatprep.subr.mxu0 0.0
    %573 = vmatpush1.msra.mxu0 0.0
    %574 = vmatprep.subr.mxu0 0.0
    %575 = vmatpush1.msra.mxu0 0.0
    %576 = vmatprep.subr.mxu0 0.0
    %577 = vmatpush1.msra.mxu0 0.0
    %578 = vmatprep.subr.mxu0 0.0
    %579 = vmatpush1.msra.mxu0 0.0
    %580 = vmatprep.subr.mxu0 0.0
    %581 = vmatpush1.msra.mxu0 0.0
    %582 = vmatprep.mubr.f32.mxu0 0.0
    %583 = vmatmul.mubr.f32.gmra.mrb[0].mxu0 %v516
    %v584 = vpop.f32.mrb[0].mxu0
    %v585 = vadd.f32 0.0, %v584
    %v586 = vpop.f32.mrb[0].mxu0
    %587 = vdwg.mxu0
    %v588 = vadd.f32 %v203, %v585
    %v589 = vtanh.pop %v588
    %v591 = vsel %vm97, %v589, 0
    %593 = vmatprep.subr.mxu0 0.0
    %594 = vmatpush1.msra.mxu0 %v211
    %595 = vmatprep.subr.mxu0 0.0
    %596 = vmatpush1.msra.mxu0 %v212
    %597 = vmatprep.subr.mxu0 0.0
    %598 = vmatpush1.msra.mxu0 %v213
    %599 = vmatprep.subr.mxu0 0.0
    %600 = vmatpush1.msra.mxu0 %v214
    %601 = vmatprep.subr.mxu0 0.0
    %602 = vmatpush1.msra.mxu0 0.0
    %603 = vmatprep.subr.mxu0 0.0
    %604 = vmatpush1.msra.mxu0 0.0
    %605 = vmatprep.subr.mxu0 0.0
    %606 = vmatpush1.msra.mxu0 0.0
    %607 = vmatprep.subr.mxu0 0.0
    %608 = vmatpush1.msra.mxu0 0.0
    %609 = vmatprep.subr.mxu0 0.0
    %610 = vmatpush1.msra.mxu0 0.0
    %611 = vmatprep.subr.mxu0 0.0
    %612 = vmatpush1.msra.mxu0 0.0
    %613 = vmatprep.subr.mxu0 0.0
    %614 = vmatpush1.msra.mxu0 0.0
    %615 = vmatprep.subr.mxu0 0.0
    %616 = vmatpush1.msra.mxu0 0.0
    %617 = vmatprep.subr.mxu0 0.0
    %618 = vmatpush1.msra.mxu0 0.0
    %619 = vmatprep.subr.mxu0 0.0
    %620 = vmatpush1.msra.mxu0 0.0
    %621 = vmatprep.subr.mxu0 0.0
    %622 = vmatpush1.msra.mxu0 0.0
    %623 = vmatprep.subr.mxu0 0.0
    %624 = vmatpush1.msra.mxu0 0.0
    %625 = vmatprep.subr.mxu0 0.0
    %626 = vmatpush1.msra.mxu0 0.0
    %627 = vmatprep.subr.mxu0 0.0
    %628 = vmatpush1.msra.mxu0 0.0
    %629 = vmatprep.subr.mxu0 0.0
    %630 = vmatpush1.msra.mxu0 0.0
    %631 = vmatprep.subr.mxu0 0.0
    %632 = vmatpush1.msra.mxu0 0.0
    %633 = vmatprep.subr.mxu0 0.0
    %634 = vmatpush1.msra.mxu0 0.0
    %635 = vmatprep.subr.mxu0 0.0
    %636 = vmatpush1.msra.mxu0 0.0
    %637 = vmatprep.subr.mxu0 0.0
    %638 = vmatpush1.msra.mxu0 0.0
    %639 = vmatprep.subr.mxu0 0.0
    %640 = vmatpush1.msra.mxu0 0.0
    %641 = vmatprep.subr.mxu0 0.0
    %642 = vmatpush1.msra.mxu0 0.0
    %643 = vmatprep.subr.mxu0 0.0
    %644 = vmatpush1.msra.mxu0 0.0
    %645 = vmatprep.subr.mxu0 0.0
    %646 = vmatpush1.msra.mxu0 0.0
    %647 = vmatprep.subr.mxu0 0.0
    %648 = vmatpush1.msra.mxu0 0.0
    %649 = vmatprep.subr.mxu0 0.0
    %650 = vmatpush1.msra.mxu0 0.0
    %651 = vmatprep.subr.mxu0 0.0
    %652 = vmatpush1.msra.mxu0 0.0
    %653 = vmatprep.subr.mxu0 0.0
    %654 = vmatpush1.msra.mxu0 0.0
    %655 = vmatprep.subr.mxu0 0.0
    %656 = vmatpush1.msra.mxu0 0.0
    %657 = vmatprep.mubr.f32.mxu0 0.0
    %658 = vmatmul.mubr.f32.gmra.mrb[0].mxu0 %v591
    %v659 = vpop.f32.mrb[0].mxu0
    %v660 = vadd.f32 0.0, %v659
    %v661 = vpop.f32.mrb[0].mxu0
    %662 = vdwg.mxu0
    %v663 = vadd.f32 %v208, %v660
    %v664 = vtanh.pop %v663
    %v665 = vld [vmem:[#allocation5] sm:$0xff]
    %v666 = vld [vmem:[#allocation5 + $0x8] sm:$0xff]
    %v667 = vld [vmem:[#allocation5 + $0x10] sm:$0xff]
    %v668 = vld [vmem:[#allocation5 + $0x18] sm:$0xff]
    %v669 = vld [vmem:[%s4] sm:$0x1]
    %v671 = vlaneseq
    %v672 = vshrl.u32 %v671, 7
    %v673 = vsub.s32 0, %v672
    %v674 = vrot.slane %v669, %v673
    %v677 = vsel %vm97, %v664, 0
    %679 = vmatprep.subr.mxu0 0.0
    %680 = vmatpush1.msra.mxu0 %v665
    %681 = vmatprep.subr.mxu0 0.0
    %682 = vmatpush1.msra.mxu0 %v666
    %683 = vmatprep.subr.mxu0 0.0
    %684 = vmatpush1.msra.mxu0 %v667
    %685 = vmatprep.subr.mxu0 0.0
    %686 = vmatpush1.msra.mxu0 %v668
    %687 = vmatprep.subr.mxu0 0.0
    %688 = vmatpush1.msra.mxu0 0.0
    %689 = vmatprep.subr.mxu0 0.0
    %690 = vmatpush1.msra.mxu0 0.0
    %691 = vmatprep.subr.mxu0 0.0
    %692 = vmatpush1.msra.mxu0 0.0
    %693 = vmatprep.subr.mxu0 0.0
    %694 = vmatpush1.msra.mxu0 0.0
    %695 = vmatprep.subr.mxu0 0.0
    %696 = vmatpush1.msra.mxu0 0.0
    %697 = vmatprep.subr.mxu0 0.0
    %698 = vmatpush1.msra.mxu0 0.0
    %699 = vmatprep.subr.mxu0 0.0
    %700 = vmatpush1.msra.mxu0 0.0
    %701 = vmatprep.subr.mxu0 0.0
    %702 = vmatpush1.msra.mxu0 0.0
    %703 = vmatprep.subr.mxu0 0.0
    %704 = vmatpush1.msra.mxu0 0.0
    %705 = vmatprep.subr.mxu0 0.0
    %706 = vmatpush1.msra.mxu0 0.0
    %707 = vmatprep.subr.mxu0 0.0
    %708 = vmatpush1.msra.mxu0 0.0
    %709 = vmatprep.subr.mxu0 0.0
    %710 = vmatpush1.msra.mxu0 0.0
    %711 = vmatprep.subr.mxu0 0.0
    %712 = vmatpush1.msra.mxu0 0.0
    %713 = vmatprep.subr.mxu0 0.0
    %714 = vmatpush1.msra.mxu0 0.0
    %715 = vmatprep.subr.mxu0 0.0
    %716 = vmatpush1.msra.mxu0 0.0
    %717 = vmatprep.subr.mxu0 0.0
    %718 = vmatpush1.msra.mxu0 0.0
    %719 = vmatprep.subr.mxu0 0.0
    %720 = vmatpush1.msra.mxu0 0.0
    %721 = vmatprep.subr.mxu0 0.0
    %722 = vmatpush1.msra.mxu0 0.0
    %723 = vmatprep.subr.mxu0 0.0
    %724 = vmatpush1.msra.mxu0 0.0
    %725 = vmatprep.subr.mxu0 0.0
    %726 = vmatpush1.msra.mxu0 0.0
    %727 = vmatprep.subr.mxu0 0.0
    %728 = vmatpush1.msra.mxu0 0.0
    %729 = vmatprep.subr.mxu0 0.0
    %730 = vmatpush1.msra.mxu0 0.0
    %731 = vmatprep.subr.mxu0 0.0
    %732 = vmatpush1.msra.mxu0 0.0
    %733 = vmatprep.subr.mxu0 0.0
    %734 = vmatpush1.msra.mxu0 0.0
    %735 = vmatprep.subr.mxu0 0.0
    %736 = vmatpush1.msra.mxu0 0.0
    %737 = vmatprep.subr.mxu0 0.0
    %738 = vmatpush1.msra.mxu0 0.0
    %739 = vmatprep.subr.mxu0 0.0
    %740 = vmatpush1.msra.mxu0 0.0
    %741 = vmatprep.subr.mxu0 0.0
    %742 = vmatpush1.msra.mxu0 0.0
    %743 = vmatprep.mubr.f32.mxu0 0.0
    %744 = vmatmul.mubr.f32.gmra.mrb[0].mxu0 %v677
    %v745 = vpop.f32.mrb[0].mxu0
    %v746 = vadd.f32 %v674, %v745
    %v747 = vpop.f32.mrb[0].mxu0
    %748 = vdwg.mxu0
    %749 = vst [vmem:[#allocation7] sm:$0xff] %v746
    // Predicated region
    $region30: #{tpu_custom_call.1} parent=1 // pred_check
      _
    $region31: #{tpu_custom_call.1} parent=1 // pred_check_branch
      %751 = sbr.rel (0) target = $region33
    $region32: #{tpu_custom_call.1} parent=1 // pred_region
      %s753 = ssub.s32 128, 128
      %754 = vsyncadd [#allocation4], %s753
      %s756 = sshll.u32 [#allocation7], 4
      %s757 = int_to_ptr.vmem [resolvable:$true] %s756
      %759 = dma.vmem_to_hbm [thread:$0]  %s757, 128, %s5, [#allocation4]
    $region33: #{tpu_custom_call.1} parent=1 // pred_fallthru
      _
    // Predicated region
    $region34: #{tpu_custom_call.1} parent=1 // pred_check
      _
    $region35: #{tpu_custom_call.1} parent=1 // pred_check_branch
      %761 = sbr.rel (0) target = $region37
    $region36: #{tpu_custom_call.1} parent=1 // pred_region
      %762 = dma.done [#allocation4], 128
    $region37: #{tpu_custom_call.1} parent=1 // pred_fallthru
      _
    %763 = vsyncpa [#allocation3], 1
    %764 = vsyncpa [#allocation6], 1
    %765 = vsyncpa [#allocation4], 1

</llo_original>
